<compile_context>
chip_gen: v7x
topology: tpu7x:2x2x1
jax: 0.10.0
libtpu: 0.0.40
codegen_flags: <defaults>
</compile_context>

<pallas_src>
import jax
import jax.numpy as jnp
from jax import lax
from jax.experimental import pallas as pl
from jax.experimental.pallas import tpu as pltpu


def _linear_kernel(x_ref, w_ref, o_ref, acc_ref):
    # x_ref: (tm, tk), w_ref: (tn, tk) in native nn.Linear layout.
    # Contract on K (dim 1 of both) -> (tm, tn); f32 accumulation on the MXU.
    partial = lax.dot_general(
        x_ref[...],
        w_ref[...],
        dimension_numbers=(((1,), (1,)), ((), ())),
        preferred_element_type=jnp.float32,
    )
    k = pl.program_id(2)

    @pl.when(k == 0)
    def _():
        acc_ref[...] = partial

    @pl.when(k != 0)
    def _():
        acc_ref[...] += partial

    @pl.when(k == pl.num_programs(2) - 1)
    def _():
        o_ref[...] = acc_ref[...].astype(o_ref.dtype)


def _round_up(x, m):
    return ((x + m - 1) // m) * m


def _sublane_align(dtype):
    # (8,128) vreg tile for 32-bit; sub-32-bit dtypes pack along sublanes.
    return max(8, 8 * (4 // jnp.dtype(dtype).itemsize))


def _pick_tile(dim, align, cap):
    """Return (tile, padded_dim). Prefer a tile that divides `dim` exactly so no
    padding copy is needed; fall back to padding only when unavoidable."""
    if dim <= cap:
        t = _round_up(dim, align)
        return t, t
    if dim % align == 0:
        best = align
        for t in range(align, cap + 1, align):
            if dim % t == 0:
                best = t
        return best, dim
    # Rare fallback: dim not aligned and larger than the cap -> pad.
    return cap, _round_up(dim, cap)


def my_linear(x, weight, *, tm_cap=1024, tn_cap=512, tk_cap=1024):
    """y = x @ weight.T, matching nn.Linear(bias=False).forward.

    x:      (..., K)  with K = in_features
    weight: (N, K)    PyTorch nn.Linear layout (out_features, in_features)
    returns (..., N)
    """
    out_dtype = x.dtype
    orig_shape = x.shape
    K = orig_shape[-1]
    x2 = x.reshape(-1, K)
    M = x2.shape[0]
    N, K2 = weight.shape
    assert K == K2, "in_features mismatch between x and weight"

    m_align = max(_sublane_align(x2.dtype), _sublane_align(out_dtype))
    n_align = 128  # lane dim of the output tile (covers weight sublane too)
    k_align = 128  # lane dim of x and weight tiles

    tm, M_pad = _pick_tile(M, m_align, tm_cap)
    tn, N_pad = _pick_tile(N, n_align, tn_cap)
    tk, K_pad = _pick_tile(K, k_align, tk_cap)

    grid_m, grid_n, grid_k = M_pad // tm, N_pad // tn, K_pad // tk

    # v7x has 2 TensorCores per chip: make sure at least one "parallel" grid
    # axis has >= 2 blocks when there is enough work to split.
    if grid_m == 1 and grid_n == 1:
        if tn % 256 == 0:
            tn //= 2
            grid_n = 2
        elif tm % (2 * m_align) == 0:
            tm //= 2
            grid_m = 2

    if (M_pad, K_pad) != (M, K):
        x2 = jnp.pad(x2, ((0, M_pad - M), (0, K_pad - K)))
    if (N_pad, K_pad) != (N, K):
        # Only hit when N or K is not a 128-multiple (zero K-padding is exact).
        # TODO(synk): mask the K/N tail in-kernel instead of materializing a
        # padded weight copy for that rare case.
        weight = jnp.pad(weight, ((0, N_pad - N), (0, K_pad - K)))

    in_b = jnp.dtype(x2.dtype).itemsize
    w_b = jnp.dtype(weight.dtype).itemsize
    out_b = jnp.dtype(out_dtype).itemsize

    # Double-buffered inputs + double-buffered output tile + f32 accumulator,
    # then 2x headroom for Mosaic internals; cap under v7x's 64 MiB VMEM.
    footprint = (2 * (tm * tk * in_b + tn * tk * w_b)
                 + 2 * tm * tn * out_b + tm * tn * 4)
    vmem_limit = int(min(max(2 * footprint, 32 * 1024 * 1024), 48 * 1024 * 1024))

    cost = pl.CostEstimate(
        flops=2 * M * N * K,
        bytes_accessed=in_b * M_pad * K_pad
        + w_b * N_pad * K_pad * grid_m
        + out_b * M_pad * N_pad,
        transcendentals=0,
    )

    out = pl.pallas_call(
        _linear_kernel,
        out_shape=jax.ShapeDtypeStruct((M_pad, N_pad), out_dtype),
        grid_spec=pltpu.PrefetchScalarGridSpec(
            num_scalar_prefetch=0,
            grid=(grid_m, grid_n, grid_k),
            in_specs=[
                # x tile: (tm, tk), streams over K.
                pl.BlockSpec((tm, tk), lambda i, j, k: (i, k)),
                # weight tile in native (N, K) layout: (tn, tk).
                pl.BlockSpec((tn, tk), lambda i, j, k: (j, k)),
            ],
            # Same output block across K => VMEM-resident; written on last k.
            out_specs=pl.BlockSpec((tm, tn), lambda i, j, k: (i, j)),
            scratch_shapes=[pltpu.VMEM((tm, tn), jnp.float32)],
        ),
        compiler_params=pltpu.CompilerParams(
            dimension_semantics=("parallel", "parallel", "arbitrary"),
            vmem_limit_bytes=vmem_limit,
        ),
        cost_estimate=cost,
    )(x2, weight)

    out = out[:M, :N]
    return out.reshape(orig_shape[:-1] + (N,))


if __name__ == "__main__":
    # MyLinear(row_size=256, col_size=128), batch=8
    batch = 8
    row_size = 256   # in_features  (K)
    col_size = 128   # out_features (N)

    key = jax.random.PRNGKey(0)
    kx, kw = jax.random.split(key)

    x = jax.random.normal(kx, (batch, row_size), dtype=jnp.float32)
    # nn.Linear weight, PyTorch layout (out_features, in_features).
    weight = jax.random.normal(kw, (col_size, row_size), dtype=jnp.float32) * 0.02

    y = my_linear(x, weight)
    y = jax.block_until_ready(y)

    # Reference: same semantics as nn.Linear(bias=False).
    y_ref = x @ weight.T
    assert y.shape == (batch, col_size)
    assert jnp.allclose(y, y_ref, atol=1e-4, rtol=1e-4), "mismatch vs reference"

    print("KERNEL_OK")
</pallas_src>

<mosaic_0001>
module attributes {stable_mosaic.version = 11 : i64} {
  func.func @_linear_kernel(%arg0: i32, %arg1: i32, %arg2: i32, %arg3: memref<8x256xf32, #tpu.memory_space<vmem>>, %arg4: memref<128x256xf32, #tpu.memory_space<vmem>>, %arg5: memref<8x128xf32, #tpu.memory_space<vmem>>, %arg6: memref<8x128xf32, #tpu.memory_space<vmem>>) attributes {dimension_semantics = [#tpu.dimension_semantics<parallel>, #tpu.dimension_semantics<parallel>, #tpu.dimension_semantics<arbitrary>], iteration_bounds = array<i64: 1, 1, 1>, scalar_prefetch = 0 : i64, scratch_operands = 1 : i64, tpu.core_type = #tpu.core_type<tc>, window_params = [{transform_indices = @transform_0, window_bounds = array<i64: 8, 256>}, {transform_indices = @transform_1, window_bounds = array<i64: 128, 256>}, {transform_indices = @transform_2, window_bounds = array<i64: 8, 128>}]} {
    %c0 = arith.constant 0 : index
    %c0_0 = arith.constant 0 : index
    %0 = vector.load %arg3[%c0, %c0_0] : memref<8x256xf32, #tpu.memory_space<vmem>>, vector<8x256xf32>
    %c0_1 = arith.constant 0 : index
    %c0_2 = arith.constant 0 : index
    %1 = vector.load %arg4[%c0_1, %c0_2] : memref<128x256xf32, #tpu.memory_space<vmem>>, vector<128x256xf32>
    %cst = arith.constant dense<0.000000e+00> : vector<8x128xf32>
    %2 = tpu.matmul %0, %1, %cst {dimension_numbers = #tpu.dot_dimension_numbers<[1], [1], [0], [0], [0, 0, 1, 0], [], []>} : vector<8x256xf32>, vector<128x256xf32>, vector<8x128xf32> -> vector<8x128xf32>
    %c0_i32 = arith.constant 0 : i32
    %3 = arith.cmpi eq, %arg2, %c0_i32 : i32
    %4 = arith.extui %3 : i1 to i32
    %c0_i32_3 = arith.constant 0 : i32
    %5 = arith.cmpi ne, %4, %c0_i32_3 : i32
    scf.if %5 {
      %c0_8 = arith.constant 0 : index
      %c0_9 = arith.constant 0 : index
      %12 = vector.load %arg6[%c0_8, %c0_9] : memref<8x128xf32, #tpu.memory_space<vmem>>, vector<8x128xf32>
      tpu.vector_store %arg6[%c0_8, %c0_9], %2 {strides = array<i32>} : memref<8x128xf32, #tpu.memory_space<vmem>>, vector<8x128xf32>,
    } else {
    }
    %c0_i32_4 = arith.constant 0 : i32
    %6 = arith.cmpi ne, %arg2, %c0_i32_4 : i32
    %7 = arith.extui %6 : i1 to i32
    %c0_i32_5 = arith.constant 0 : i32
    %8 = arith.cmpi ne, %7, %c0_i32_5 : i32
    scf.if %8 {
      %c0_8 = arith.constant 0 : index
      %c0_9 = arith.constant 0 : index
      %12 = vector.load %arg6[%c0_8, %c0_9] : memref<8x128xf32, #tpu.memory_space<vmem>>, vector<8x128xf32>
      %13 = arith.addf %12, %2 : vector<8x128xf32>
      %c0_10 = arith.constant 0 : index
      %c0_11 = arith.constant 0 : index
      %14 = vector.load %arg6[%c0_10, %c0_11] : memref<8x128xf32, #tpu.memory_space<vmem>>, vector<8x128xf32>
      tpu.vector_store %arg6[%c0_10, %c0_11], %13 {strides = array<i32>} : memref<8x128xf32, #tpu.memory_space<vmem>>, vector<8x128xf32>,
    } else {
    }
    %c0_i32_6 = arith.constant 0 : i32
    %9 = arith.cmpi eq, %arg2, %c0_i32_6 : i32
    %10 = arith.extui %9 : i1 to i32
    %c0_i32_7 = arith.constant 0 : i32
    %11 = arith.cmpi ne, %10, %c0_i32_7 : i32
    scf.if %11 {
      %c0_8 = arith.constant 0 : index
      %c0_9 = arith.constant 0 : index
      %12 = vector.load %arg6[%c0_8, %c0_9] : memref<8x128xf32, #tpu.memory_space<vmem>>, vector<8x128xf32>
      %c0_10 = arith.constant 0 : index
      %c0_11 = arith.constant 0 : index
      %13 = vector.load %arg5[%c0_10, %c0_11] : memref<8x128xf32, #tpu.memory_space<vmem>>, vector<8x128xf32>
      tpu.vector_store %arg5[%c0_10, %c0_11], %12 {strides = array<i32>} : memref<8x128xf32, #tpu.memory_space<vmem>>, vector<8x128xf32>,
    } else {
    }
    return
  }
  func.func @transform_0(%arg0: i32, %arg1: i32, %arg2: i32) -> (i32, i32) {
    %c0_i32 = arith.constant 0 : i32
    return %arg0, %arg2 : i32, i32
  }
  func.func @transform_1(%arg0: i32, %arg1: i32, %arg2: i32) -> (i32, i32) {
    %c0_i32 = arith.constant 0 : i32
    return %arg1, %arg2 : i32, i32
  }
  func.func @transform_2(%arg0: i32, %arg1: i32, %arg2: i32) -> (i32, i32) {
    %c0_i32 = arith.constant 0 : i32
    return %arg0, %arg1 : i32, i32
  }
}

</mosaic_0001>

<llo_original>
// kernel: tpu_custom_call.1
$region0: #{tpu_custom_call.1}
  #allocation0 [shape = 'u32[]', space=smem, size = 0x4, offset = 0x4, fixed_abs, tag = 'smem constant byte address 0x4 - core index']
  #allocation1 [shape = 'u32[144,128]{1,0:T(1,128)}', space=vmem, size = 0x12000, scoped, tag = 'internal scratch']
  #allocation2 [shape = 'f32[8,128]{1,0:T(8,128)}', space=vmem, size = 0x1000, scoped, tag = 'scratch operand']
  %s0 = inlined_call_operand.hbm [shape: f32[8,256], index: 0, kind: input, shape index: {}]
  %s1 = inlined_call_operand.hbm [shape: f32[128,256], index: 1, kind: input, shape index: {}]
  %s2 = inlined_call_operand.hbm [shape: f32[8,128], index: 2, kind: output, shape index: {}]
  %s3 = sld [smem:[#allocation0]]
  $region38: #{tpu_custom_call.1} parent=0
    _
  %s5 = ssub.s32 1, %s3
  %s6 = scalar_select 0, %s5, %s3
  $region1: #{tpu_custom_call.1} parent=0
    #allocation3 [shape = 'u8[8192]{0}', space=vmem, size = 0x2000, scoped, tag = 'input window, operand 0, single buffered']
    #allocation4 [shape = 's32[1]{0}', space=sflag, size = 0x4, scoped, tag = 'scoped memory for tpu_custom_call.1']
    #allocation5 [shape = 's32[1]{0}', space=sflag, size = 0x4, scoped, tag = 'scoped memory for tpu_custom_call.1']
    #allocation6 [shape = 'u8[131072]{0}', space=vmem, size = 0x20000, scoped, tag = 'input window, operand 1, single buffered']
    #allocation7 [shape = 's32[1]{0}', space=sflag, size = 0x4, scoped, tag = 'scoped memory for tpu_custom_call.1']
    #allocation8 [shape = 'u8[4096]{0}', space=vmem, size = 0x1000, scoped, tag = 'output window, operand 0, single buffered']
    %7 = vsyncpa [#allocation4], 0
    %8 = vsyncpa [#allocation7], 0
    %9 = vsyncpa [#allocation5], 0
    // Predicated region
    $region2: #{tpu_custom_call.1} parent=1 // pred_check
      _
    $region3: #{tpu_custom_call.1} parent=1 // pred_check_branch
      %11 = sbr.rel (0) target = $region5
    $region4: #{tpu_custom_call.1} parent=1 // pred_region
      %s13 = ssub.s32 256, 256
      %14 = vsyncadd [#allocation4], %s13
      %s16 = sshll.u32 [#allocation3], 4
      %s17 = int_to_ptr.vmem [resolvable:$true] %s16
      %19 = dma.hbm_to_vmem [thread:$0]  %s0, 256, %s17, [#allocation4]
    $region5: #{tpu_custom_call.1} parent=1 // pred_fallthru
      _
    // Predicated region
    $region6: #{tpu_custom_call.1} parent=1 // pred_check
      _
    $region7: #{tpu_custom_call.1} parent=1 // pred_check_branch
      %21 = sbr.rel (0) target = $region9
    $region8: #{tpu_custom_call.1} parent=1 // pred_region
      %s23 = ssub.s32 4096, 4096
      %24 = vsyncadd [#allocation7], %s23
      %s25 = sshll.u32 [#allocation6], 4
      %s26 = int_to_ptr.vmem [resolvable:$true] %s25
      %31 = dma.hbm_to_vmem [thread:$0]  %s1, 4096, %s26, [#allocation7], 256, 256, 16
    $region9: #{tpu_custom_call.1} parent=1 // pred_fallthru
      _
    // Predicated region
    $region10: #{tpu_custom_call.1} parent=1 // pred_check
      _
    $region11: #{tpu_custom_call.1} parent=1 // pred_check_branch
      %33 = sbr.rel (0) target = $region13
    $region12: #{tpu_custom_call.1} parent=1 // pred_region
      %34 = dma.done [#allocation4], 256
    $region13: #{tpu_custom_call.1} parent=1 // pred_fallthru
      _
    // Predicated region
    $region14: #{tpu_custom_call.1} parent=1 // pred_check
      _
    $region15: #{tpu_custom_call.1} parent=1 // pred_check_branch
      %36 = sbr.rel (0) target = $region17
    $region16: #{tpu_custom_call.1} parent=1 // pred_region
      %37 = dma.done [#allocation7], 4096
    $region17: #{tpu_custom_call.1} parent=1 // pred_fallthru
      _
    %v38 = vld [vmem:[#allocation3] sm:$0xff]
    %v39 = vld [vmem:[#allocation3 + $0x8] sm:$0xff]
    %v40 = vld [vmem:[#allocation6] sm:$0xff]
    %v41 = vld [vmem:[#allocation6 + $0x8] sm:$0xff]
    %v42 = vld [vmem:[#allocation6 + $0x10] sm:$0xff]
    %v43 = vld [vmem:[#allocation6 + $0x18] sm:$0xff]
    %v44 = vld [vmem:[#allocation6 + $0x20] sm:$0xff]
    %v45 = vld [vmem:[#allocation6 + $0x28] sm:$0xff]
    %v46 = vld [vmem:[#allocation6 + $0x30] sm:$0xff]
    %v47 = vld [vmem:[#allocation6 + $0x38] sm:$0xff]
    %v48 = vld [vmem:[#allocation6 + $0x40] sm:$0xff]
    %v49 = vld [vmem:[#allocation6 + $0x48] sm:$0xff]
    %v50 = vld [vmem:[#allocation6 + $0x50] sm:$0xff]
    %v51 = vld [vmem:[#allocation6 + $0x58] sm:$0xff]
    %v52 = vld [vmem:[#allocation6 + $0x60] sm:$0xff]
    %v53 = vld [vmem:[#allocation6 + $0x68] sm:$0xff]
    %v54 = vld [vmem:[#allocation6 + $0x70] sm:$0xff]
    %v55 = vld [vmem:[#allocation6 + $0x78] sm:$0xff]
    %v56 = vld [vmem:[#allocation6 + $0x80] sm:$0xff]
    %v57 = vld [vmem:[#allocation6 + $0x88] sm:$0xff]
    %v58 = vld [vmem:[#allocation6 + $0x90] sm:$0xff]
    %v59 = vld [vmem:[#allocation6 + $0x98] sm:$0xff]
    %v60 = vld [vmem:[#allocation6 + $0xa0] sm:$0xff]
    %v61 = vld [vmem:[#allocation6 + $0xa8] sm:$0xff]
    %v62 = vld [vmem:[#allocation6 + $0xb0] sm:$0xff]
    %v63 = vld [vmem:[#allocation6 + $0xb8] sm:$0xff]
    %v64 = vld [vmem:[#allocation6 + $0xc0] sm:$0xff]
    %v65 = vld [vmem:[#allocation6 + $0xc8] sm:$0xff]
    %v66 = vld [vmem:[#allocation6 + $0xd0] sm:$0xff]
    %v67 = vld [vmem:[#allocation6 + $0xd8] sm:$0xff]
    %v68 = vld [vmem:[#allocation6 + $0xe0] sm:$0xff]
    %v69 = vld [vmem:[#allocation6 + $0xe8] sm:$0xff]
    %v70 = vld [vmem:[#allocation6 + $0xf0] sm:$0xff]
    %v71 = vld [vmem:[#allocation6 + $0xf8] sm:$0xff]
    %72 = vmatprep.subr.mxu0 %v41
    %73 = vmatpush1.xpose.msra.mxu0 %v40
    %74 = vmatprep.subr.mxu0 %v43
    %75 = vmatpush1.xpose.msra.mxu0 %v42
    %76 = vmatprep.subr.mxu0 %v45
    %77 = vmatpush1.xpose.msra.mxu0 %v44
    %78 = vmatprep.subr.mxu0 %v47
    %79 = vmatpush1.xpose.msra.mxu0 %v46
    %80 = vmatprep.subr.mxu0 %v49
    %81 = vmatpush1.xpose.msra.mxu0 %v48
    %82 = vmatprep.subr.mxu0 %v51
    %83 = vmatpush1.xpose.msra.mxu0 %v50
    %84 = vmatprep.subr.mxu0 %v53
    %85 = vmatpush1.xpose.msra.mxu0 %v52
    %86 = vmatprep.subr.mxu0 %v55
    %87 = vmatpush1.xpose.msra.mxu0 %v54
    %88 = vmatprep.subr.mxu0 %v57
    %89 = vmatpush1.xpose.msra.mxu0 %v56
    %90 = vmatprep.subr.mxu0 %v59
    %91 = vmatpush1.xpose.msra.mxu0 %v58
    %92 = vmatprep.subr.mxu0 %v61
    %93 = vmatpush1.xpose.msra.mxu0 %v60
    %94 = vmatprep.subr.mxu0 %v63
    %95 = vmatpush1.xpose.msra.mxu0 %v62
    %96 = vmatprep.subr.mxu0 %v65
    %97 = vmatpush1.xpose.msra.mxu0 %v64
    %98 = vmatprep.subr.mxu0 %v67
    %99 = vmatpush1.xpose.msra.mxu0 %v66
    %100 = vmatprep.subr.mxu0 %v69
    %101 = vmatpush1.xpose.msra.mxu0 %v68
    %102 = vmatprep.subr.mxu0 %v71
    %103 = vmatpush1.xpose.msra.mxu0 %v70
    %104 = vmatprep.subr.mxu0 0.0
    %105 = vmatpush1.xpose.msra.mxu0 0.0
    %106 = vmatprep.subr.mxu0 0.0
    %107 = vmatpush1.xpose.msra.mxu0 0.0
    %108 = vmatprep.subr.mxu0 0.0
    %109 = vmatpush1.xpose.msra.mxu0 0.0
    %110 = vmatprep.subr.mxu0 0.0
    %111 = vmatpush1.xpose.msra.mxu0 0.0
    %112 = vmatprep.subr.mxu0 0.0
    %113 = vmatpush1.xpose.msra.mxu0 0.0
    %114 = vmatprep.subr.mxu0 0.0
    %115 = vmatpush1.xpose.msra.mxu0 0.0
    %116 = vmatprep.subr.mxu0 0.0
    %117 = vmatpush1.xpose.msra.mxu0 0.0
    %118 = vmatprep.subr.mxu0 0.0
    %119 = vmatpush1.xpose.msra.mxu0 0.0
    %120 = vmatprep.subr.mxu0 0.0
    %121 = vmatpush1.xpose.msra.mxu0 0.0
    %122 = vmatprep.subr.mxu0 0.0
    %123 = vmatpush1.xpose.msra.mxu0 0.0
    %124 = vmatprep.subr.mxu0 0.0
    %125 = vmatpush1.xpose.msra.mxu0 0.0
    %126 = vmatprep.subr.mxu0 0.0
    %127 = vmatpush1.xpose.msra.mxu0 0.0
    %128 = vmatprep.subr.mxu0 0.0
    %129 = vmatpush1.xpose.msra.mxu0 0.0
    %130 = vmatprep.subr.mxu0 0.0
    %131 = vmatpush1.xpose.msra.mxu0 0.0
    %132 = vmatprep.subr.mxu0 0.0
    %133 = vmatpush1.xpose.msra.mxu0 0.0
    %134 = vmatprep.subr.mxu0 0.0
    %135 = vmatpush1.xpose.msra.mxu0 0.0
    %136 = vmatprep.mubr.f32.mxu0 %v39
    %137 = vmatmul.mubr.f32.gmra.mrb[0].mxu0 %v38
    %v138 = vpop.f32.mrb[0].mxu0
    %v139 = vadd.f32 0.0, %v138
    %v140 = vpop.f32.mrb[0].mxu0
    %141 = vdwg.mxu0
    %p142 = scmp.eq.s32.totalorder 0, 0
    // Predicated region
    $region18: #{tpu_custom_call.1} parent=1 // pred_check
      %p143 = pneg %p142
    $region19: #{tpu_custom_call.1} parent=1 // pred_check_branch
      %145 = sbr.rel (%p143) target = $region21
    $region20: #{tpu_custom_call.1} parent=1 // pred_region
      %146 = vst [vmem:[#allocation2] sm:$0xff] %v139
    $region21: #{tpu_custom_call.1} parent=1 // pred_fallthru
      _
    %p147 = scmp.ne.s32.totalorder 0, 0
    // Predicated region
    $region22: #{tpu_custom_call.1} parent=1 // pred_check
      %p148 = pneg %p147
    $region23: #{tpu_custom_call.1} parent=1 // pred_check_branch
      %150 = sbr.rel (%p148) target = $region25
    $region24: #{tpu_custom_call.1} parent=1 // pred_region
      %v151 = vld [vmem:[#allocation2] sm:$0xff]
      %v152 = vadd.f32 %v151, %v139
      %153 = vst [vmem:[#allocation2] sm:$0xff] %v152
    $region25: #{tpu_custom_call.1} parent=1 // pred_fallthru
      _
    // Predicated region
    $region26: #{tpu_custom_call.1} parent=1 // pred_check
      %p154 = pneg %p142
    $region27: #{tpu_custom_call.1} parent=1 // pred_check_branch
      %156 = sbr.rel (%p154) target = $region29
    $region28: #{tpu_custom_call.1} parent=1 // pred_region
      %v157 = vld [vmem:[#allocation2] sm:$0xff]
      %158 = vst [vmem:[#allocation8] sm:$0xff] %v157
    $region29: #{tpu_custom_call.1} parent=1 // pred_fallthru
      _
    // Predicated region
    $region30: #{tpu_custom_call.1} parent=1 // pred_check
      _
    $region31: #{tpu_custom_call.1} parent=1 // pred_check_branch
      %160 = sbr.rel (0) target = $region33
    $region32: #{tpu_custom_call.1} parent=1 // pred_region
      %s162 = ssub.s32 128, 128
      %163 = vsyncadd [#allocation5], %s162
      %s165 = sshll.u32 [#allocation8], 4
      %s166 = int_to_ptr.vmem [resolvable:$true] %s165
      %168 = dma.vmem_to_hbm [thread:$0]  %s166, 128, %s2, [#allocation5]
    $region33: #{tpu_custom_call.1} parent=1 // pred_fallthru
      _
    // Predicated region
    $region34: #{tpu_custom_call.1} parent=1 // pred_check
      _
    $region35: #{tpu_custom_call.1} parent=1 // pred_check_branch
      %170 = sbr.rel (0) target = $region37
    $region36: #{tpu_custom_call.1} parent=1 // pred_region
      %171 = dma.done [#allocation5], 128
    $region37: #{tpu_custom_call.1} parent=1 // pred_fallthru
      _
    %172 = vsyncpa [#allocation4], 1
    %173 = vsyncpa [#allocation7], 1
    %174 = vsyncpa [#allocation5], 1

</llo_original>
